<compile_context>
chip_gen: v6e
topology: v6e:2x2x1
jax: 0.10.0
libtpu: 0.0.40
codegen_flags: <defaults>
</compile_context>

<pallas_src>
import functools

import jax
import jax.numpy as jnp
from jax.experimental import pallas as pl
from jax.experimental.pallas import tpu as pltpu


def _round_up(v, m):
    return (v + m - 1) // m * m


def _pick_batch(n):
    """Largest B dividing n with n // B >= 2 (two v7x TensorCores stay busy)
    and B <= 32 (bounds the im2col slab footprint)."""
    best = 1
    for b in range(1, n + 1):
        if n % b == 0 and n // b >= 2 and b <= 32:
            best = b
    return best


def _shake_block_kernel(x_ref, w1_ref, w2_ref, bias_ref, mask_ref, o_ref,
                        *, Wp, lanes, Cp):
    """One grid step = B images folded into the lane axis.

    Per-image segment layout (SEG lanes, multiple of 128):
      x_ref  lane 2*(Wp+1) + q  <->  zero-padded flat position q
      h      lane   (Wp+1) + q  <->  padded conv1 feature at position q
      o_ref  lane           q   <->  padded conv2+shortcut output at q

    x_ref    : (1, Cp, lanes + 128) f32  (128-lane zero overhang on the right)
    w1_ref   : (C2p, 9*Cp)  bf16   fused conv1 weights (BN1 scale folded)
    w2_ref   : (Cp, 9*C2p)  bf16   fused conv2 weights (BN2 scale + 0.5 gate)
    bias_ref : (C2p, 2)     f32    col 0 = BN1 bias, col 1 = BN2 bias (pre-avg)
    mask_ref : (1, lanes)   f32    1.0 at lanes (Wp+1)+q for interior q
    o_ref    : (1, Cp, lanes) f32
    """
    offs = [dy * Wp + dx for dy in range(3) for dx in range(3)]   # 0 .. 2*Wp+2

    x = x_ref[0]                                   # (Cp, lanes + 128) f32
    a = jnp.maximum(x, 0.0)                        # ReLU(x); zero halo unaffected

    # conv1 (both branches fused) as ONE bf16 MXU matmul over the 9-tap patch.
    p1 = jnp.concatenate([a[:, o:o + lanes] for o in offs], axis=0)   # (9*Cp, lanes)
    h = jnp.dot(w1_ref[...], p1.astype(jnp.bfloat16),
                preferred_element_type=jnp.float32)                   # (C2p, lanes) f32
    h = jnp.maximum(h + bias_ref[:, 0:1], 0.0) * mask_ref[...]        # BN1 bias + ReLU + zero-pad
    # 128-lane zero overhang so the last segment's tap slices stay in bounds.
    h = jnp.concatenate([h, jnp.zeros((h.shape[0], 128), h.dtype)], axis=1)

    # conv2 (both branches + 0.5 shake average fused) as ONE bf16 MXU matmul.
    p2 = jnp.concatenate([h[:, o:o + lanes] for o in offs], axis=0)   # (9*C2p, lanes)
    out = jnp.dot(w2_ref[...], p2.astype(jnp.bfloat16),
                  preferred_element_type=jnp.float32)                 # (Cp, lanes) f32
    out = out + bias_ref[0:Cp, 1:2]                                   # BN2 bias (pre-averaged)

    # identity shortcut (equal_io, stride=1): pre-ReLU x realigned to lane q.
    res = x[:, 2 * (Wp + 1): 2 * (Wp + 1) + lanes]
    o_ref[0] = (out + res).astype(o_ref.dtype)


def _pack_params(branch1, branch2, C, Cp, C2p):
    """branchX = (w1_oihw, bn1_scale, bn1_bias, w2_oihw, bn2_scale, bn2_bias)
    with eval-mode BN folded to per-channel scale/bias.  Returns fused bf16
    weights and an f32 bias table."""
    w1a, s1a, b1a, w2a, s2a, b2a = branch1
    w1b, s1b, b1b, w2b, s2b, b2b = branch2

    def to_kio(w_oihw):             # (Cout, Cin, 3, 3) -> (9, Cin, Cout), k = kh*3+kw
        return jnp.transpose(w_oihw, (2, 3, 1, 0)).reshape(
            9, w_oihw.shape[1], w_oihw.shape[0])

    # conv1: fold BN1 scale into the weights, fuse branches along Cout.
    w1 = jnp.concatenate([to_kio(w1a) * s1a[None, None, :],
                          to_kio(w1b) * s1b[None, None, :]], axis=2)      # (9, C, 2C)
    w1 = jnp.pad(w1, ((0, 0), (0, Cp - C), (0, 0)))                       # (9, Cp, 2C)
    w1 = jnp.pad(w1.reshape(9 * Cp, 2 * C).T,
                 ((0, C2p - 2 * C), (0, 0)))                              # (C2p, 9*Cp)

    # conv2: fold BN2 scale and the 0.5 eval gate, fuse branches along Cin,
    # pad Cout -> Cp so the output stores are sublane-dense.
    w2 = jnp.concatenate([0.5 * to_kio(w2a) * s2a[None, None, :],
                          0.5 * to_kio(w2b) * s2b[None, None, :]], axis=1)  # (9, 2C, C)
    w2 = jnp.pad(w2, ((0, 0), (0, C2p - 2 * C), (0, 0)))                  # (9, C2p, C)
    w2 = jnp.pad(w2.reshape(9 * C2p, C).T, ((0, Cp - C), (0, 0)))         # (Cp, 9*C2p)

    b1 = jnp.pad(jnp.concatenate([b1a, b1b]), (0, C2p - 2 * C))           # (C2p,)
    b2 = jnp.pad(0.5 * (b2a + b2b), (0, C2p - C))                         # (C2p,)
    bias = jnp.stack([b1, b2], axis=1)                                    # (C2p, 2)
    return w1.astype(jnp.bfloat16), w2.astype(jnp.bfloat16), bias


@jax.jit
def shake_block_forward(x_nchw, branch1, branch2):
    """x_nchw: (N, C, H, W) float32.  branchX = (conv1_w OIHW, bn1_scale,
    bn1_bias, conv2_w OIHW, bn2_scale, bn2_bias), BN in eval mode."""
    N, C, H, W = x_nchw.shape
    Hp, Wp = H + 2, W + 2
    P = Hp * Wp                        # flat padded positions per image
    AX = 2 * (Wp + 1)                  # x anchor inside a segment
    AH = Wp + 1                        # h / mask anchor inside a segment
    SEG = _round_up(AX + P, 128)       # lane-dense per-image segment
    Cp = _round_up(C, 8)               # sublane-aligned channels
    C2p = _round_up(2 * C, 8)          # sublane-aligned fused intermediate channels
    B = _pick_batch(N)
    G = N // B
    LB = B * SEG                       # lanes per grid step

    w1, w2, bias = _pack_params(branch1, branch2, C, Cp, C2p)

    # x slab: channel-pad, spatial zero-pad, flatten, place at lane AX + q,
    # fold B images into the lane axis, add a 128-lane zero overhang.
    xp = jnp.pad(x_nchw, ((0, 0), (0, Cp - C), (1, 1), (1, 1)))           # (N, Cp, Hp, Wp)
    xf = jnp.pad(xp.reshape(N, Cp, P), ((0, 0), (0, 0), (AX, SEG - AX - P)))
    xf = xf.reshape(G, B, Cp, SEG).transpose(0, 2, 1, 3).reshape(G, Cp, LB)
    xf = jnp.pad(xf, ((0, 0), (0, 0), (0, 128)))                          # (G, Cp, LB + 128)

    # Interior mask aligned to the h anchor, tiled over the B segments.
    yy = jax.lax.broadcasted_iota(jnp.int32, (Hp, Wp), 0)
    xx = jax.lax.broadcasted_iota(jnp.int32, (Hp, Wp), 1)
    interior = (yy >= 1) & (yy <= H) & (xx >= 1) & (xx <= W)
    m_seg = jnp.pad(interior.astype(jnp.float32).reshape(P), (AH, SEG - AH - P))
    mask = jnp.tile(m_seg, B).reshape(1, LB)

    kernel = functools.partial(_shake_block_kernel, Wp=Wp, lanes=LB, Cp=Cp)
    flops = 2 * (C2p * 9 * Cp + Cp * 9 * C2p) * LB * G
    bytes_accessed = (xf.size * 4 + G * Cp * LB * 4 + w1.size * 2
                      + w2.size * 2 + bias.size * 4 + mask.size * 4)

    out_slab = pl.pallas_call(
        kernel,
        out_shape=jax.ShapeDtypeStruct((G, Cp, LB), jnp.float32),
        grid_spec=pltpu.PrefetchScalarGridSpec(
            num_scalar_prefetch=0,
            grid=(G,),
            in_specs=[pl.BlockSpec((1, Cp, LB + 128), lambda g: (g, 0, 0)),
                      pl.BlockSpec((C2p, 9 * Cp), lambda g: (0, 0)),
                      pl.BlockSpec((Cp, 9 * C2p), lambda g: (0, 0)),
                      pl.BlockSpec((C2p, 2), lambda g: (0, 0)),
                      pl.BlockSpec((1, LB), lambda g: (0, 0))],
            out_specs=pl.BlockSpec((1, Cp, LB), lambda g: (g, 0, 0)),
        ),
        compiler_params=pltpu.CompilerParams(
            dimension_semantics=("parallel",)),
        cost_estimate=pl.CostEstimate(flops=int(flops), transcendentals=0,
                                      bytes_accessed=int(bytes_accessed)),
    )(xf, w1, w2, bias, mask)

    # Un-fold the batch; slice + reshape + slice (no pad) recovers the interior.
    out = out_slab.reshape(G, Cp, B, SEG).transpose(0, 2, 1, 3).reshape(N, Cp, SEG)
    return out[:, :C, :P].reshape(N, C, Hp, Wp)[:, :, 1:H + 1, 1:W + 1]


# ----------------------------- test / reference -----------------------------

def _make_bn(key, c, eps=1e-5):
    k1, k2, k3, k4 = jax.random.split(key, 4)
    gamma = 1.0 + 0.1 * jax.random.normal(k1, (c,), jnp.float32)
    beta = 0.1 * jax.random.normal(k2, (c,), jnp.float32)
    mean = 0.1 * jax.random.normal(k3, (c,), jnp.float32)
    var = 1.0 + 0.1 * jax.random.uniform(k4, (c,), jnp.float32)
    scale = gamma / jnp.sqrt(var + eps)
    bias = beta - mean * scale
    return scale, bias


def _branch_ref(x, w1, s1, b1, w2, s2, b2):
    dn = ('NCHW', 'OIHW', 'NCHW')
    hp = jax.lax.Precision.HIGHEST
    h = jnp.maximum(x, 0.0)
    h = jax.lax.conv_general_dilated(h, w1, (1, 1), 'SAME',
                                     dimension_numbers=dn, precision=hp)
    h = h * s1[None, :, None, None] + b1[None, :, None, None]
    h = jnp.maximum(h, 0.0)
    h = jax.lax.conv_general_dilated(h, w2, (1, 1), 'SAME',
                                     dimension_numbers=dn, precision=hp)
    h = h * s2[None, :, None, None] + b2[None, :, None, None]
    return h


if __name__ == "__main__":
    N, C, H, W = 2, 4, 16, 16          # equal_io (in_ch == out_ch), stride == 1
    key = jax.random.PRNGKey(0)
    keys = jax.random.split(key, 9)

    x = jax.random.normal(keys[0], (N, C, H, W), jnp.float32)

    w1a = 0.1 * jax.random.normal(keys[1], (C, C, 3, 3), jnp.float32)
    w2a = 0.1 * jax.random.normal(keys[2], (C, C, 3, 3), jnp.float32)
    w1b = 0.1 * jax.random.normal(keys[3], (C, C, 3, 3), jnp.float32)
    w2b = 0.1 * jax.random.normal(keys[4], (C, C, 3, 3), jnp.float32)
    s1a, b1a = _make_bn(keys[5], C)
    s2a, b2a = _make_bn(keys[6], C)
    s1b, b1b = _make_bn(keys[7], C)
    s2b, b2b = _make_bn(keys[8], C)

    branch1 = (w1a, s1a, b1a, w2a, s2a, b2a)
    branch2 = (w1b, s1b, b1b, w2b, s2b, b2b)

    out = shake_block_forward(x, branch1, branch2)
    out = jax.block_until_ready(out)

    # pure-JAX reference (eval-mode ShakeShake = 0.5*(h1+h2), identity shortcut)
    ref = 0.5 * (_branch_ref(x, *branch1) + _branch_ref(x, *branch2)) + x

    assert out.shape == (N, C, H, W)
    # bf16 MXU operands (f32 accumulate) vs a Precision.HIGHEST f32 reference.
    assert jnp.allclose(out, ref, atol=1e-2, rtol=1e-2), "mismatch vs reference"
    print("KERNEL_OK")
</pallas_src>

<mosaic_0001>
module attributes {stable_mosaic.version = 11 : i64} {
  func.func @_shake_block_kernel(%arg0: i32, %arg1: memref<1x8x512xf32, #tpu.memory_space<vmem>>, %arg2: memref<8x72xbf16, #tpu.memory_space<vmem>>, %arg3: memref<8x72xbf16, #tpu.memory_space<vmem>>, %arg4: memref<8x2xf32, #tpu.memory_space<vmem>>, %arg5: memref<1x384xf32, #tpu.memory_space<vmem>>, %arg6: memref<1x8x384xf32, #tpu.memory_space<vmem>>) attributes {dimension_semantics = [#tpu.dimension_semantics<parallel>], iteration_bounds = array<i64: 2>, scalar_prefetch = 0 : i64, scratch_operands = 0 : i64, tpu.core_type = #tpu.core_type<tc>, window_params = [{transform_indices = @transform_0, window_bounds = array<i64: 1, 8, 512>}, {pipeline_mode = #tpu.pipeline_mode<synchronous>, transform_indices = @transform_1, window_bounds = array<i64: 8, 72>}, {pipeline_mode = #tpu.pipeline_mode<synchronous>, transform_indices = @transform_2, window_bounds = array<i64: 8, 72>}, {pipeline_mode = #tpu.pipeline_mode<synchronous>, transform_indices = @transform_3, window_bounds = array<i64: 8, 2>}, {pipeline_mode = #tpu.pipeline_mode<synchronous>, transform_indices = @transform_4, window_bounds = array<i64: 1, 384>}, {transform_indices = @transform_5, window_bounds = array<i64: 1, 8, 384>}]} {
    %c0 = arith.constant 0 : index
    %c0_0 = arith.constant 0 : index
    %c0_1 = arith.constant 0 : index
    %0 = vector.load %arg1[%c0, %c0_0, %c0_1] : memref<1x8x512xf32, #tpu.memory_space<vmem>>, vector<1x8x512xf32>
    %1 = vector.shape_cast %0 : vector<1x8x512xf32> to vector<8x512xf32>
    %cst = arith.constant 0.000000e+00 : f32
    %2 = vector.broadcast %cst : f32 to vector<8x512xf32>
    %3 = arith.maximumf %1, %2 : vector<8x512xf32>
    %4 = vector.extract_strided_slice %3 {offsets = [0, 0], sizes = [8, 384], strides = [1, 1]} : vector<8x512xf32> to vector<8x384xf32>
    %5 = vector.extract_strided_slice %3 {offsets = [0, 1], sizes = [8, 384], strides = [1, 1]} : vector<8x512xf32> to vector<8x384xf32>
    %6 = vector.extract_strided_slice %3 {offsets = [0, 2], sizes = [8, 384], strides = [1, 1]} : vector<8x512xf32> to vector<8x384xf32>
    %7 = vector.extract_strided_slice %3 {offsets = [0, 18], sizes = [8, 384], strides = [1, 1]} : vector<8x512xf32> to vector<8x384xf32>
    %8 = vector.extract_strided_slice %3 {offsets = [0, 19], sizes = [8, 384], strides = [1, 1]} : vector<8x512xf32> to vector<8x384xf32>
    %9 = vector.extract_strided_slice %3 {offsets = [0, 20], sizes = [8, 384], strides = [1, 1]} : vector<8x512xf32> to vector<8x384xf32>
    %10 = vector.extract_strided_slice %3 {offsets = [0, 36], sizes = [8, 384], strides = [1, 1]} : vector<8x512xf32> to vector<8x384xf32>
    %11 = vector.extract_strided_slice %3 {offsets = [0, 37], sizes = [8, 384], strides = [1, 1]} : vector<8x512xf32> to vector<8x384xf32>
    %12 = vector.extract_strided_slice %3 {offsets = [0, 38], sizes = [8, 384], strides = [1, 1]} : vector<8x512xf32> to vector<8x384xf32>
    %13 = tpu.concatenate %4, %5, %6, %7, %8, %9, %10, %11, %12 in 0 : vector<8x384xf32>, vector<8x384xf32>, vector<8x384xf32>, vector<8x384xf32>, vector<8x384xf32>, vector<8x384xf32>, vector<8x384xf32>, vector<8x384xf32>, vector<8x384xf32> -> vector<72x384xf32>
    %c0_2 = arith.constant 0 : index
    %c0_3 = arith.constant 0 : index
    %14 = vector.load %arg2[%c0_2, %c0_3] : memref<8x72xbf16, #tpu.memory_space<vmem>>, vector<8x72xbf16>
    %15 = arith.truncf %13 : vector<72x384xf32> to vector<72x384xbf16>
    %cst_4 = arith.constant dense<0.000000e+00> : vector<8x384xf32>
    %16 = tpu.matmul %14, %15, %cst_4 {dimension_numbers = #tpu.dot_dimension_numbers<[1], [0], [0], [1], [0, 0, 1, 1], [], []>} : vector<8x72xbf16>, vector<72x384xbf16>, vector<8x384xf32> -> vector<8x384xf32>
    %c0_5 = arith.constant 0 : index
    %c0_6 = arith.constant 0 : index
    %17 = vector.load %arg4[%c0_5, %c0_6] : memref<8x2xf32, #tpu.memory_space<vmem>>, vector<8x1xf32>
    %18 = vector.broadcast %17 : vector<8x1xf32> to vector<8x384xf32>
    %19 = arith.addf %16, %18 : vector<8x384xf32>
    %cst_7 = arith.constant 0.000000e+00 : f32
    %20 = vector.broadcast %cst_7 : f32 to vector<8x384xf32>
    %21 = arith.maximumf %19, %20 : vector<8x384xf32>
    %c0_8 = arith.constant 0 : index
    %c0_9 = arith.constant 0 : index
    %22 = vector.load %arg5[%c0_8, %c0_9] : memref<1x384xf32, #tpu.memory_space<vmem>>, vector<1x384xf32>
    %23 = vector.broadcast %22 : vector<1x384xf32> to vector<8x384xf32>
    %24 = arith.mulf %21, %23 : vector<8x384xf32>
    %cst_10 = arith.constant 0.000000e+00 : f32
    %25 = vector.broadcast %cst_10 : f32 to vector<8x128xf32>
    %26 = tpu.concatenate %24, %25 in 1 : vector<8x384xf32>, vector<8x128xf32> -> vector<8x512xf32>
    %27 = vector.extract_strided_slice %26 {offsets = [0, 0], sizes = [8, 384], strides = [1, 1]} : vector<8x512xf32> to vector<8x384xf32>
    %28 = vector.extract_strided_slice %26 {offsets = [0, 1], sizes = [8, 384], strides = [1, 1]} : vector<8x512xf32> to vector<8x384xf32>
    %29 = vector.extract_strided_slice %26 {offsets = [0, 2], sizes = [8, 384], strides = [1, 1]} : vector<8x512xf32> to vector<8x384xf32>
    %30 = vector.extract_strided_slice %26 {offsets = [0, 18], sizes = [8, 384], strides = [1, 1]} : vector<8x512xf32> to vector<8x384xf32>
    %31 = vector.extract_strided_slice %26 {offsets = [0, 19], sizes = [8, 384], strides = [1, 1]} : vector<8x512xf32> to vector<8x384xf32>
    %32 = vector.extract_strided_slice %26 {offsets = [0, 20], sizes = [8, 384], strides = [1, 1]} : vector<8x512xf32> to vector<8x384xf32>
    %33 = vector.extract_strided_slice %26 {offsets = [0, 36], sizes = [8, 384], strides = [1, 1]} : vector<8x512xf32> to vector<8x384xf32>
    %34 = vector.extract_strided_slice %26 {offsets = [0, 37], sizes = [8, 384], strides = [1, 1]} : vector<8x512xf32> to vector<8x384xf32>
    %35 = vector.extract_strided_slice %26 {offsets = [0, 38], sizes = [8, 384], strides = [1, 1]} : vector<8x512xf32> to vector<8x384xf32>
    %36 = tpu.concatenate %27, %28, %29, %30, %31, %32, %33, %34, %35 in 0 : vector<8x384xf32>, vector<8x384xf32>, vector<8x384xf32>, vector<8x384xf32>, vector<8x384xf32>, vector<8x384xf32>, vector<8x384xf32>, vector<8x384xf32>, vector<8x384xf32> -> vector<72x384xf32>
    %c0_11 = arith.constant 0 : index
    %c0_12 = arith.constant 0 : index
    %37 = vector.load %arg3[%c0_11, %c0_12] : memref<8x72xbf16, #tpu.memory_space<vmem>>, vector<8x72xbf16>
    %38 = arith.truncf %36 : vector<72x384xf32> to vector<72x384xbf16>
    %cst_13 = arith.constant dense<0.000000e+00> : vector<8x384xf32>
    %39 = tpu.matmul %37, %38, %cst_13 {dimension_numbers = #tpu.dot_dimension_numbers<[1], [0], [0], [1], [0, 0, 1, 1], [], []>} : vector<8x72xbf16>, vector<72x384xbf16>, vector<8x384xf32> -> vector<8x384xf32>
    %c0_14 = arith.constant 0 : index
    %c1 = arith.constant 1 : index
    %40 = vector.load %arg4[%c0_14, %c1] : memref<8x2xf32, #tpu.memory_space<vmem>>, vector<8x1xf32>
    %41 = vector.broadcast %40 : vector<8x1xf32> to vector<8x384xf32>
    %42 = arith.addf %39, %41 : vector<8x384xf32>
    %43 = vector.extract_strided_slice %1 {offsets = [0, 38], sizes = [8, 384], strides = [1, 1]} : vector<8x512xf32> to vector<8x384xf32>
    %44 = arith.addf %42, %43 : vector<8x384xf32>
    %c0_15 = arith.constant 0 : index
    %c0_16 = arith.constant 0 : index
    %c0_17 = arith.constant 0 : index
    %45 = vector.load %arg6[%c0_15, %c0_16, %c0_17] : memref<1x8x384xf32, #tpu.memory_space<vmem>>, vector<1x8x384xf32>
    %46 = vector.shape_cast %45 : vector<1x8x384xf32> to vector<8x384xf32>
    %47 = vector.shape_cast %44 : vector<8x384xf32> to vector<1x8x384xf32>
    tpu.vector_store %arg6[%c0_15, %c0_16, %c0_17], %47 {strides = array<i32>} : memref<1x8x384xf32, #tpu.memory_space<vmem>>, vector<1x8x384xf32>,
    return
  }
  func.func @transform_0(%arg0: i32) -> (i32, i32, i32) {
    %c0_i32 = arith.constant 0 : i32
    %c0_i32_0 = arith.constant 0 : i32
    %c0_i32_1 = arith.constant 0 : i32
    return %arg0, %c0_i32, %c0_i32_0 : i32, i32, i32
  }
  func.func @transform_1(%arg0: i32) -> (i32, i32) {
    %c0_i32 = arith.constant 0 : i32
    %c0_i32_0 = arith.constant 0 : i32
    %c0_i32_1 = arith.constant 0 : i32
    return %c0_i32, %c0_i32_0 : i32, i32
  }
  func.func @transform_2(%arg0: i32) -> (i32, i32) {
    %c0_i32 = arith.constant 0 : i32
    %c0_i32_0 = arith.constant 0 : i32
    %c0_i32_1 = arith.constant 0 : i32
    return %c0_i32, %c0_i32_0 : i32, i32
  }
  func.func @transform_3(%arg0: i32) -> (i32, i32) {
    %c0_i32 = arith.constant 0 : i32
    %c0_i32_0 = arith.constant 0 : i32
    %c0_i32_1 = arith.constant 0 : i32
    return %c0_i32, %c0_i32_0 : i32, i32
  }
  func.func @transform_4(%arg0: i32) -> (i32, i32) {
    %c0_i32 = arith.constant 0 : i32
    %c0_i32_0 = arith.constant 0 : i32
    %c0_i32_1 = arith.constant 0 : i32
    return %c0_i32, %c0_i32_0 : i32, i32
  }
  func.func @transform_5(%arg0: i32) -> (i32, i32, i32) {
    %c0_i32 = arith.constant 0 : i32
    %c0_i32_0 = arith.constant 0 : i32
    %c0_i32_1 = arith.constant 0 : i32
    return %arg0, %c0_i32, %c0_i32_0 : i32, i32, i32
  }
}

</mosaic_0001>

<llo_original>
// kernel: shake_block_forward.1
$region0: #{shake_block_forward.1}
  #allocation0 [shape = 'u32[]', space=smem, size = 0x4, offset = 0x4, fixed_abs, tag = 'smem constant byte address 0x4 - core index']
  #allocation1 [shape = 'u32[144,128]{1,0:T(1,128)}', space=vmem, size = 0x12000, scoped, tag = 'internal scratch']
  %s0 = inlined_call_operand.vmem [shape: f32[2,8,512], index: 0, kind: input, shape index: {}]
  %s1 = inlined_call_operand.vmem [shape: bf16[8,72], index: 1, kind: input, shape index: {}]
  %s2 = inlined_call_operand.vmem [shape: bf16[8,72], index: 2, kind: input, shape index: {}]
  %s3 = inlined_call_operand.vmem [shape: f32[8,2], index: 3, kind: input, shape index: {}]
  %s4 = inlined_call_operand.vmem [shape: f32[1,384], index: 4, kind: input, shape index: {}]
  %s5 = inlined_call_operand.vmem [shape: f32[2,8,384], index: 5, kind: output, shape index: {}]
  %s6 = sld [smem:[#allocation0]]
  $region53: #{shake_block_forward.1} parent=0
    _
  %s8 = ssub.s32 1, %s6
  %s9 = scalar_select 0, %s8, %s6
  loop: start=0, step=1, limit=4
  $region2: #{shake_block_forward.1} parent=0 // loop_pre_header
    _
  $region3: #{shake_block_forward.1} parent=0 // loop_header
    %s11 = sphi 0, %s15
    %p12 = scmp.ge.s32.totalorder %s11, 4
    %s21 = sphi 0, %s23
    %s24 = sphi 0, %s21
    %s25 = sphi 0, %s24
    %s41 = sphi 0, %s25
    %s45 = sphi 0, %s45
    %s47 = sphi 0, %s45
    %s48 = sphi 0, %s47
    %s62 = sphi 0, %s48
    %s66 = sphi 0, %s66
    %s68 = sphi 0, %s66
    %s69 = sphi 0, %s68
    %s83 = sphi 0, %s69
    %s87 = sphi 0, %s87
    %s89 = sphi 0, %s87
    %s90 = sphi 0, %s89
    %s104 = sphi 0, %s90
    %s108 = sphi 0, %s108
    %s110 = sphi 0, %s108
    %s111 = sphi 0, %s110
    %s125 = sphi 0, %s111
    %s131 = sphi 0, %s133
    %s134 = sphi 0, %s131
    %s135 = sphi 0, %s134
    %s151 = sphi 0, %s135
  $region4: #{shake_block_forward.1} parent=0 // loop_header_branch
    %14 = sbr.rel (%p12) target = $region8
  $region5: #{shake_block_forward.1} parent=0 // loop_body
    %s16 = ssub.s32 %s11, 1
    %s17 = ssub.s32 %s11, 2
    %s18 = sadd.s32 %s11, 1
    %s19 = ssub.s32 %s11, %s18
    %p20 = scmp.eq.s32.totalorder %s19, 0
    %s22 = sadd.s32 %s21, 1
    %s23 = scalar_select %p20, %s21, %s22
    %p26 = pneg %p20
    %p27 = scmp.eq.s32.totalorder %s11, 1
    %p28 = por %p26, %p27
    %p29 = scmp.ne.s32.totalorder %s21, %s24
    %p30 = scmp.eq.s32.totalorder %s11, 0
    %p31 = por %p29, %p30
    %p32 = scmp.ne.s32.totalorder %s21, %s24
    %p33 = scmp.eq.s32.totalorder %s16, 1
    %p34 = por %p32, %p33
    %p35 = scmp.ne.s32.totalorder %s24, %s25
    %p36 = scmp.eq.s32.totalorder %s16, 0
    %p37 = por %p35, %p36
    %p38 = scmp.ne.s32.totalorder %s24, %s25
    %p39 = scmp.eq.s32.totalorder %s17, 1
    %p40 = por %p38, %p39
    %p42 = scmp.ne.s32.totalorder %s25, %s41
    %p43 = scmp.eq.s32.totalorder %s17, 0
    %p44 = por %p42, %p43
    %s46 = sadd.s32 %s45, 1
    %p49 = scmp.eq.s32.totalorder %s11, 1
    %p50 = scmp.ne.s32.totalorder %s45, %s47
    %p51 = scmp.eq.s32.totalorder %s11, 0
    %p52 = por %p50, %p51
    %p53 = scmp.ne.s32.totalorder %s45, %s47
    %p54 = scmp.eq.s32.totalorder %s16, 1
    %p55 = por %p53, %p54
    %p56 = scmp.ne.s32.totalorder %s47, %s48
    %p57 = scmp.eq.s32.totalorder %s16, 0
    %p58 = por %p56, %p57
    %p59 = scmp.ne.s32.totalorder %s47, %s48
    %p60 = scmp.eq.s32.totalorder %s17, 1
    %p61 = por %p59, %p60
    %p63 = scmp.ne.s32.totalorder %s48, %s62
    %p64 = scmp.eq.s32.totalorder %s17, 0
    %p65 = por %p63, %p64
    %s67 = sadd.s32 %s66, 1
    %p70 = scmp.eq.s32.totalorder %s11, 1
    %p71 = scmp.ne.s32.totalorder %s66, %s68
    %p72 = scmp.eq.s32.totalorder %s11, 0
    %p73 = por %p71, %p72
    %p74 = scmp.ne.s32.totalorder %s66, %s68
    %p75 = scmp.eq.s32.totalorder %s16, 1
    %p76 = por %p74, %p75
    %p77 = scmp.ne.s32.totalorder %s68, %s69
    %p78 = scmp.eq.s32.totalorder %s16, 0
    %p79 = por %p77, %p78
    %p80 = scmp.ne.s32.totalorder %s68, %s69
    %p81 = scmp.eq.s32.totalorder %s17, 1
    %p82 = por %p80, %p81
    %p84 = scmp.ne.s32.totalorder %s69, %s83
    %p85 = scmp.eq.s32.totalorder %s17, 0
    %p86 = por %p84, %p85
    %s88 = sadd.s32 %s87, 1
    %p91 = scmp.eq.s32.totalorder %s11, 1
    %p92 = scmp.ne.s32.totalorder %s87, %s89
    %p93 = scmp.eq.s32.totalorder %s11, 0
    %p94 = por %p92, %p93
    %p95 = scmp.ne.s32.totalorder %s87, %s89
    %p96 = scmp.eq.s32.totalorder %s16, 1
    %p97 = por %p95, %p96
    %p98 = scmp.ne.s32.totalorder %s89, %s90
    %p99 = scmp.eq.s32.totalorder %s16, 0
    %p100 = por %p98, %p99
    %p101 = scmp.ne.s32.totalorder %s89, %s90
    %p102 = scmp.eq.s32.totalorder %s17, 1
    %p103 = por %p101, %p102
    %p105 = scmp.ne.s32.totalorder %s90, %s104
    %p106 = scmp.eq.s32.totalorder %s17, 0
    %p107 = por %p105, %p106
    %s109 = sadd.s32 %s108, 1
    %p112 = scmp.eq.s32.totalorder %s11, 1
    %p113 = scmp.ne.s32.totalorder %s108, %s110
    %p114 = scmp.eq.s32.totalorder %s11, 0
    %p115 = por %p113, %p114
    %p116 = scmp.ne.s32.totalorder %s108, %s110
    %p117 = scmp.eq.s32.totalorder %s16, 1
    %p118 = por %p116, %p117
    %p119 = scmp.ne.s32.totalorder %s110, %s111
    %p120 = scmp.eq.s32.totalorder %s16, 0
    %p121 = por %p119, %p120
    %p122 = scmp.ne.s32.totalorder %s110, %s111
    %p123 = scmp.eq.s32.totalorder %s17, 1
    %p124 = por %p122, %p123
    %p126 = scmp.ne.s32.totalorder %s111, %s125
    %p127 = scmp.eq.s32.totalorder %s17, 0
    %p128 = por %p126, %p127
    %s129 = ssub.s32 %s11, %s18
    %p130 = scmp.eq.s32.totalorder %s129, 0
    %s132 = sadd.s32 %s131, 1
    %s133 = scalar_select %p130, %s131, %s132
    %p136 = pneg %p130
    %p137 = scmp.eq.s32.totalorder %s11, 1
    %p138 = por %p136, %p137
    %p139 = scmp.ne.s32.totalorder %s131, %s134
    %p140 = scmp.eq.s32.totalorder %s11, 0
    %p141 = por %p139, %p140
    %p142 = scmp.ne.s32.totalorder %s131, %s134
    %p143 = scmp.eq.s32.totalorder %s16, 1
    %p144 = por %p142, %p143
    %p145 = scmp.ne.s32.totalorder %s134, %s135
    %p146 = scmp.eq.s32.totalorder %s16, 0
    %p147 = por %p145, %p146
    %p148 = scmp.ne.s32.totalorder %s134, %s135
    %p149 = scmp.eq.s32.totalorder %s17, 1
    %p150 = por %p148, %p149
    %p152 = scmp.ne.s32.totalorder %s135, %s151
    %p153 = scmp.eq.s32.totalorder %s17, 0
    %p154 = por %p152, %p153
    %p155 = scmp.le.s32.totalorder 1, %s11
    %p156 = scmp.lt.s32.totalorder %s11, 3
    %p157 = pnand %p155, %p156
    %p158 = pneg %p157
    // Predicated region
    $region9: #{shake_block_forward.1} parent=5 // pred_check
      _
    $region10: #{shake_block_forward.1} parent=5 // pred_check_branch
      %160 = sbr.rel (%p157) target = $region12
    $region11: #{shake_block_forward.1} parent=5 // pred_region
      %s161 = ssub.s32 %s11, 1
      // Predicated region
      $region13: #{shake_block_forward.1} parent=11 // pred_check
        %p162 = pneg %p58
      $region14: #{shake_block_forward.1} parent=11 // pred_check_branch
        %164 = sbr.rel (%p162) target = $region16
      $region15: #{shake_block_forward.1} parent=11 // pred_region
        _
      $region16: #{shake_block_forward.1} parent=11 // pred_fallthru
        _
      // Predicated region
      $region17: #{shake_block_forward.1} parent=11 // pred_check
        %p165 = pneg %p79
      $region18: #{shake_block_forward.1} parent=11 // pred_check_branch
        %167 = sbr.rel (%p165) target = $region20
      $region19: #{shake_block_forward.1} parent=11 // pred_region
        _
      $region20: #{shake_block_forward.1} parent=11 // pred_fallthru
        _
      // Predicated region
      $region21: #{shake_block_forward.1} parent=11 // pred_check
        %p168 = pneg %p100
      $region22: #{shake_block_forward.1} parent=11 // pred_check_branch
        %170 = sbr.rel (%p168) target = $region24
      $region23: #{shake_block_forward.1} parent=11 // pred_region
        _
      $region24: #{shake_block_forward.1} parent=11 // pred_fallthru
        _
      // Predicated region
      $region25: #{shake_block_forward.1} parent=11 // pred_check
        %p171 = pneg %p121
      $region26: #{shake_block_forward.1} parent=11 // pred_check_branch
        %173 = sbr.rel (%p171) target = $region28
      $region27: #{shake_block_forward.1} parent=11 // pred_region
        _
      $region28: #{shake_block_forward.1} parent=11 // pred_fallthru
        _
    $region12: #{shake_block_forward.1} parent=5 // pred_fallthru
      _
    %p174 = scmp.lt.s32.totalorder %s11, 2
    // Predicated region
    $region29: #{shake_block_forward.1} parent=5 // pred_check
      %p175 = pneg %p174
    $region30: #{shake_block_forward.1} parent=5 // pred_check_branch
      %177 = sbr.rel (%p175) target = $region32
    $region31: #{shake_block_forward.1} parent=5 // pred_region
      // Predicated region
      $region33: #{shake_block_forward.1} parent=31 // pred_check
        %p178 = pneg %p31
      $region34: #{shake_block_forward.1} parent=31 // pred_check_branch
        %180 = sbr.rel (%p178) target = $region36
      $region35: #{shake_block_forward.1} parent=31 // pred_region
        %p181 = scmp.lt.s32.totalorder %s11, 1
        %s182 = scalar_select %p181, %s11, 1
        %s183 = smul.addr %s182, 4
        %s184 = smul.addr %s183, 8
        %s185 = scalar_lea.vmem %s0, %s184
      $region36: #{shake_block_forward.1} parent=31 // pred_fallthru
        _
    $region32: #{shake_block_forward.1} parent=5 // pred_fallthru
      _
    %p186 = scmp.le.s32.totalorder 1, %s11
    %p187 = scmp.lt.s32.totalorder %s11, 3
    %p188 = pnand %p186, %p187
    %p189 = pneg %p188
    // Predicated region
    $region37: #{shake_block_forward.1} parent=5 // pred_check
      _
    $region38: #{shake_block_forward.1} parent=5 // pred_check_branch
      %191 = sbr.rel (%p188) target = $region40
    $region39: #{shake_block_forward.1} parent=5 // pred_region
      %s192 = ssub.s32 %s11, 1
      %p193 = scmp.lt.s32.totalorder %s16, 1
      %s194 = scalar_select %p193, %s16, 1
      %s195 = smul.addr %s194, 4
      %s196 = smul.addr %s195, 8
      %s197 = scalar_lea.vmem %s0, %s196
      %p198 = pneg %p37
      %p199 = pneg %p34
      %p200 = pneg %p58
      %p201 = pneg %p55
      %p202 = pneg %p79
      %p203 = pneg %p76
      %p204 = pneg %p100
      %p205 = pneg %p97
      %p206 = pneg %p121
      %p207 = pneg %p118
      %p208 = pneg %p147
      %p209 = pneg %p144
      %p210 = scmp.lt.s32.totalorder %s16, 1
      %s211 = scalar_select %p210, %s16, 1
      %s212 = smul.addr %s211, 3
      %s213 = smul.addr %s212, 8
      %s214 = scalar_lea.vmem %s5, %s213
      %p215 = scmp.lt.s32.totalorder %s16, 1
      %s216 = scalar_select %p215, %s16, 1
      %s217 = smul.addr %s216, 4
      %s218 = smul.addr %s217, 8
      %s219 = scalar_lea.vmem %s0, %s218
      %p220 = scmp.lt.s32.totalorder %s16, 1
      %s221 = scalar_select %p220, %s16, 1
      %s222 = smul.addr %s221, 3
      %s223 = smul.addr %s222, 8
      %s224 = scalar_lea.vmem %s5, %s223
      %v226 = vld [vmem:[%s219] sm:$0xff]
      %v227 = vld [vmem:[%s219 + $0x8] sm:$0xff]
      %v228 = vld [vmem:[%s219 + $0x10] sm:$0xff]
      %v229 = vld [vmem:[%s219 + $0x18] sm:$0xff]
      %v230 = vmax.f32 %v226, 0.0
      %v231 = vmax.f32 %v227, 0.0
      %v232 = vmax.f32 %v228, 0.0
      %v233 = vmax.f32 %v229, 0.0
      %238 = vrot.lane.b32.xlu0 %v230, 127
      %v239 = vpop.permute.xlu0 %238
      %240 = vrot.lane.b32.xlu0 %v231, 127
      %v241 = vpop.permute.xlu0 %240
      %242 = vrot.lane.b32.xlu0 %v232, 127
      %v243 = vpop.permute.xlu0 %242
      %244 = vrot.lane.b32.xlu0 %v233, 127
      %v245 = vpop.permute.xlu0 %244
      %vm246 = vcmask 1039360
      %v247 = vsel %vm246, %v239, %v241
      %v248 = vsel %vm246, %v241, %v243
      %v249 = vsel %vm246, %v243, %v245
      %253 = vrot.lane.b32.xlu0 %v230, 126
      %v254 = vpop.permute.xlu0 %253
      %255 = vrot.lane.b32.xlu0 %v231, 126
      %v256 = vpop.permute.xlu0 %255
      %257 = vrot.lane.b32.xlu0 %v232, 126
      %v258 = vpop.permute.xlu0 %257
      %259 = vrot.lane.b32.xlu0 %v233, 126
      %v260 = vpop.permute.xlu0 %259
      %vm261 = vcmask 1031168
      %v262 = vsel %vm261, %v254, %v256
      %v263 = vsel %vm261, %v256, %v258
      %v264 = vsel %vm261, %v258, %v260
      %268 = vrot.lane.b32.xlu0 %v230, 110
      %v269 = vpop.permute.xlu0 %268
      %270 = vrot.lane.b32.xlu0 %v231, 110
      %v271 = vpop.permute.xlu0 %270
      %272 = vrot.lane.b32.xlu0 %v232, 110
      %v273 = vpop.permute.xlu0 %272
      %274 = vrot.lane.b32.xlu0 %v233, 110
      %v275 = vpop.permute.xlu0 %274
      %vm276 = vcmask 900096
      %v277 = vsel %vm276, %v269, %v271
      %v278 = vsel %vm276, %v271, %v273
      %v279 = vsel %vm276, %v273, %v275
      %283 = vrot.lane.b32.xlu0 %v230, 109
      %v284 = vpop.permute.xlu0 %283
      %285 = vrot.lane.b32.xlu0 %v231, 109
      %v286 = vpop.permute.xlu0 %285
      %287 = vrot.lane.b32.xlu0 %v232, 109
      %v288 = vpop.permute.xlu0 %287
      %289 = vrot.lane.b32.xlu0 %v233, 109
      %v290 = vpop.permute.xlu0 %289
      %vm291 = vcmask 891904
      %v292 = vsel %vm291, %v284, %v286
      %v293 = vsel %vm291, %v286, %v288
      %v294 = vsel %vm291, %v288, %v290
      %298 = vrot.lane.b32.xlu0 %v230, 108
      %v299 = vpop.permute.xlu0 %298
      %300 = vrot.lane.b32.xlu0 %v231, 108
      %v301 = vpop.permute.xlu0 %300
      %302 = vrot.lane.b32.xlu0 %v232, 108
      %v303 = vpop.permute.xlu0 %302
      %304 = vrot.lane.b32.xlu0 %v233, 108
      %v305 = vpop.permute.xlu0 %304
      %vm306 = vcmask 883712
      %v307 = vsel %vm306, %v299, %v301
      %v308 = vsel %vm306, %v301, %v303
      %v309 = vsel %vm306, %v303, %v305
      %313 = vrot.lane.b32.xlu0 %v230, 92
      %v314 = vpop.permute.xlu0 %313
      %315 = vrot.lane.b32.xlu0 %v231, 92
      %v316 = vpop.permute.xlu0 %315
      %317 = vrot.lane.b32.xlu0 %v232, 92
      %v318 = vpop.permute.xlu0 %317
      %319 = vrot.lane.b32.xlu0 %v233, 92
      %v320 = vpop.permute.xlu0 %319
      %vm321 = vcmask 752640
      %v322 = vsel %vm321, %v314, %v316
      %v323 = vsel %vm321, %v316, %v318
      %v324 = vsel %vm321, %v318, %v320
      %328 = vrot.lane.b32.xlu0 %v230, 91
      %v329 = vpop.permute.xlu0 %328
      %330 = vrot.lane.b32.xlu0 %v231, 91
      %v331 = vpop.permute.xlu0 %330
      %332 = vrot.lane.b32.xlu0 %v232, 91
      %v333 = vpop.permute.xlu0 %332
      %334 = vrot.lane.b32.xlu0 %v233, 91
      %v335 = vpop.permute.xlu0 %334
      %vm336 = vcmask 744448
      %v337 = vsel %vm336, %v329, %v331
      %v338 = vsel %vm336, %v331, %v333
      %v339 = vsel %vm336, %v333, %v335
      %343 = vrot.lane.b32.xlu0 %v230, 90
      %v344 = vpop.permute.xlu0 %343
      %345 = vrot.lane.b32.xlu0 %v231, 90
      %v346 = vpop.permute.xlu0 %345
      %347 = vrot.lane.b32.xlu0 %v232, 90
      %v348 = vpop.permute.xlu0 %347
      %349 = vrot.lane.b32.xlu0 %v233, 90
      %v350 = vpop.permute.xlu0 %349
      %vm351 = vcmask 736256
      %v352 = vsel %vm351, %v344, %v346
      %v353 = vsel %vm351, %v346, %v348
      %v354 = vsel %vm351, %v348, %v350
      %v358 = vld [vmem:[%s1] sm:$0xf]
      %v359 = vpack.c.bf16 %v247, %v230
      %v360 = vpack.c.bf16 %v248, %v231
      %v361 = vpack.c.bf16 %v249, %v232
      %v362 = vpack.c.bf16 %v277, %v262
      %v363 = vpack.c.bf16 %v278, %v263
      %v364 = vpack.c.bf16 %v279, %v264
      %v365 = vpack.c.bf16 %v307, %v292
      %v366 = vpack.c.bf16 %v308, %v293
      %v367 = vpack.c.bf16 %v309, %v294
      %v368 = vpack.c.bf16 %v337, %v322
      %v369 = vpack.c.bf16 %v338, %v323
      %v370 = vpack.c.bf16 %v339, %v324
      %v371 = vpack.c.bf16 %v352, %v352
      %v372 = vpack.c.bf16 %v353, %v353
      %v373 = vpack.c.bf16 %v354, %v354
      %v374 = vld [vmem:[%s3] sm:$0xff]
      %376 = vset.pattern.permute.xlu0 0
      %377 = vperm.xlu0 %376, %v374
      %v378 = vpop.permute.xlu0 %377
      %vm380 = vcmask 588800
      %v382 = vsel %vm380, %v358, 0
      %vm384 = vcmask 1043456
      %v386 = vsel %vm384, %v371, 0
      %v389 = vsel %vm384, %v372, 0
      %v392 = vsel %vm384, %v373, 0
      %394 = vmatprep.subr.bf16.mxu0 0
      %395 = vmatpush1.bf16.msra.mxu0 0
      %396 = vmatprep.subr.bf16.mxu0 0
      %397 = vmatpush1.bf16.msra.mxu0 0
      %398 = vmatprep.subr.bf16.mxu0 0
      %399 = vmatpush1.bf16.msra.mxu0 0
      %400 = vmatprep.subr.bf16.mxu0 %v389
      %401 = vmatpush1.bf16.msra.mxu0 %v386
      %402 = vmatprep.subr.bf16.mxu0 %v369
      %403 = vmatpush1.bf16.msra.mxu0 %v368
      %404 = vmatprep.subr.bf16.mxu0 %v366
      %405 = vmatpush1.bf16.msra.mxu0 %v365
      %406 = vmatprep.subr.bf16.mxu0 %v363
      %407 = vmatpush1.bf16.msra.mxu0 %v362
      %408 = vmatprep.subr.bf16.mxu0 %v360
      %409 = vmatpush1.bf16.msra.mxu0 %v359
      %410 = vmatprep.subr.bf16.mxu0 0
      %411 = vmatpush2.bf16.msra.mxu0 0
      %412 = vmatprep.subr.bf16.mxu0 0
      %413 = vmatpush2.bf16.msra.mxu0 0
      %414 = vmatprep.subr.bf16.mxu0 0
      %415 = vmatpush2.bf16.msra.mxu0 0
      %416 = vmatprep.subr.bf16.mxu0 0
      %417 = vmatpush2.bf16.msra.mxu0 0
      %418 = vmatprep.subr.bf16.mxu0 0
      %419 = vmatpush2.bf16.msra.mxu0 0
      %420 = vmatprep.subr.bf16.mxu0 0
      %421 = vmatpush2.bf16.msra.mxu0 0
      %422 = vmatprep.subr.bf16.mxu0 0
      %423 = vmatpush2.bf16.msra.mxu0 0
      %424 = vmatprep.subr.bf16.mxu0 0
      %425 = vmatpush2.bf16.msra.mxu0 0
      %426 = vmatprep.mubr.bf16.mxu0 0
      %427 = vmatmul.mubr.bf16.gmra.mxu0 %v382
      %v428 = vpop.f32.mrf.mxu0
      %v429 = vadd.f32 %v378, %v428
      %v430 = vpop.f32.mrf.mxu0
      %v431 = vadd.f32 %v378, %v430
      %v432 = vpop.f32.mrf.mxu0
      %v433 = vpop.f32.mrf.mxu0
      %434 = vdwg.mxu0
      %435 = vmatprep.subr.bf16.mxu0 0
      %436 = vmatpush1.bf16.msra.mxu0 0
      %437 = vmatprep.subr.bf16.mxu0 0
      %438 = vmatpush1.bf16.msra.mxu0 0
      %439 = vmatprep.subr.bf16.mxu0 0
      %440 = vmatpush1.bf16.msra.mxu0 0
      %441 = vmatprep.subr.bf16.mxu0 0
      %442 = vmatpush1.bf16.msra.mxu0 %v392
      %443 = vmatprep.subr.bf16.mxu0 0
      %444 = vmatpush1.bf16.msra.mxu0 %v370
      %445 = vmatprep.subr.bf16.mxu0 0
      %446 = vmatpush1.bf16.msra.mxu0 %v367
      %447 = vmatprep.subr.bf16.mxu0 0
      %448 = vmatpush1.bf16.msra.mxu0 %v364
      %449 = vmatprep.subr.bf16.mxu0 0
      %450 = vmatpush1.bf16.msra.mxu0 %v361
      %451 = vmatprep.subr.bf16.mxu0 0
      %452 = vmatpush2.bf16.msra.mxu0 0
      %453 = vmatprep.subr.bf16.mxu0 0
      %454 = vmatpush2.bf16.msra.mxu0 0
      %455 = vmatprep.subr.bf16.mxu0 0
      %456 = vmatpush2.bf16.msra.mxu0 0
      %457 = vmatprep.subr.bf16.mxu0 0
      %458 = vmatpush2.bf16.msra.mxu0 0
      %459 = vmatprep.subr.bf16.mxu0 0
      %460 = vmatpush2.bf16.msra.mxu0 0
      %461 = vmatprep.subr.bf16.mxu0 0
      %462 = vmatpush2.bf16.msra.mxu0 0
      %463 = vmatprep.subr.bf16.mxu0 0
      %464 = vmatpush2.bf16.msra.mxu0 0
      %465 = vmatprep.subr.bf16.mxu0 0
      %466 = vmatpush2.bf16.msra.mxu0 0
      %467 = vmatprep.mubr.bf16.mxu0 0
      %468 = vmatmul.mubr.bf16.gmra.mxu0 %v382
      %v469 = vpop.f32.mrf.mxu0
      %v470 = vadd.f32 %v378, %v469
      %v471 = vpop.f32.mrf.mxu0
      %v472 = vpop.f32.mrf.mxu0
      %v473 = vpop.f32.mrf.mxu0
      %474 = vdwg.mxu0
      %v475 = vmax.f32 %v429, 0.0
      %v476 = vmax.f32 %v431, 0.0
      %v477 = vmax.f32 %v470, 0.0
      %v478 = vld [vmem:[%s4] sm:$0x7]
      %v480 = vlaneseq
      %v481 = vshrl.u32 %v480, 7
      %v482 = vsub.s32 0, %v481
      %v483 = vrot.slane %v478, %v482
      %v484 = vlaneseq
      %v485 = vshrl.u32 %v484, 7
      %v486 = vsub.s32 1, %v485
      %v487 = vrot.slane %v478, %v486
      %v488 = vlaneseq
      %v489 = vshrl.u32 %v488, 7
      %v490 = vsub.s32 2, %v489
      %v491 = vrot.slane %v478, %v490
      %v495 = vmul.f32 %v475, %v483
      %v496 = vmul.f32 %v476, %v487
      %v497 = vmul.f32 %v477, %v491
      %502 = vrot.lane.b32.xlu0 %v495, 127
      %v503 = vpop.permute.xlu0 %502
      %504 = vrot.lane.b32.xlu0 %v496, 127
      %v505 = vpop.permute.xlu0 %504
      %506 = vrot.lane.b32.xlu0 %v497, 127
      %v507 = vpop.permute.xlu0 %506
      %508 = vrot.lane.b32.xlu0 0.0, 127
      %v509 = vpop.permute.xlu0 %508
      %v510 = vsel %vm246, %v503, %v505
      %v511 = vsel %vm246, %v505, %v507
      %v512 = vsel %vm246, %v507, %v509
      %516 = vrot.lane.b32.xlu0 %v495, 126
      %v517 = vpop.permute.xlu0 %516
      %518 = vrot.lane.b32.xlu0 %v496, 126
      %v519 = vpop.permute.xlu0 %518
      %520 = vrot.lane.b32.xlu0 %v497, 126
      %v521 = vpop.permute.xlu0 %520
      %522 = vrot.lane.b32.xlu0 0.0, 126
      %v523 = vpop.permute.xlu0 %522
      %v524 = vsel %vm261, %v517, %v519
      %v525 = vsel %vm261, %v519, %v521
      %v526 = vsel %vm261, %v521, %v523
      %530 = vrot.lane.b32.xlu0 %v495, 110
      %v531 = vpop.permute.xlu0 %530
      %532 = vrot.lane.b32.xlu0 %v496, 110
      %v533 = vpop.permute.xlu0 %532
      %534 = vrot.lane.b32.xlu0 %v497, 110
      %v535 = vpop.permute.xlu0 %534
      %536 = vrot.lane.b32.xlu0 0.0, 110
      %v537 = vpop.permute.xlu0 %536
      %v538 = vsel %vm276, %v531, %v533
      %v539 = vsel %vm276, %v533, %v535
      %v540 = vsel %vm276, %v535, %v537
      %544 = vrot.lane.b32.xlu0 %v495, 109
      %v545 = vpop.permute.xlu0 %544
      %546 = vrot.lane.b32.xlu0 %v496, 109
      %v547 = vpop.permute.xlu0 %546
      %548 = vrot.lane.b32.xlu0 %v497, 109
      %v549 = vpop.permute.xlu0 %548
      %550 = vrot.lane.b32.xlu0 0.0, 109
      %v551 = vpop.permute.xlu0 %550
      %v552 = vsel %vm291, %v545, %v547
      %v553 = vsel %vm291, %v547, %v549
      %v554 = vsel %vm291, %v549, %v551
      %558 = vrot.lane.b32.xlu0 %v495, 108
      %v559 = vpop.permute.xlu0 %558
      %560 = vrot.lane.b32.xlu0 %v496, 108
      %v561 = vpop.permute.xlu0 %560
      %562 = vrot.lane.b32.xlu0 %v497, 108
      %v563 = vpop.permute.xlu0 %562
      %564 = vrot.lane.b32.xlu0 0.0, 108
      %v565 = vpop.permute.xlu0 %564
      %v566 = vsel %vm306, %v559, %v561
      %v567 = vsel %vm306, %v561, %v563
      %v568 = vsel %vm306, %v563, %v565
      %572 = vrot.lane.b32.xlu0 %v495, 92
      %v573 = vpop.permute.xlu0 %572
      %574 = vrot.lane.b32.xlu0 %v496, 92
      %v575 = vpop.permute.xlu0 %574
      %576 = vrot.lane.b32.xlu0 %v497, 92
      %v577 = vpop.permute.xlu0 %576
      %578 = vrot.lane.b32.xlu0 0.0, 92
      %v579 = vpop.permute.xlu0 %578
      %v580 = vsel %vm321, %v573, %v575
      %v581 = vsel %vm321, %v575, %v577
      %v582 = vsel %vm321, %v577, %v579
      %586 = vrot.lane.b32.xlu0 %v495, 91
      %v587 = vpop.permute.xlu0 %586
      %588 = vrot.lane.b32.xlu0 %v496, 91
      %v589 = vpop.permute.xlu0 %588
      %590 = vrot.lane.b32.xlu0 %v497, 91
      %v591 = vpop.permute.xlu0 %590
      %592 = vrot.lane.b32.xlu0 0.0, 91
      %v593 = vpop.permute.xlu0 %592
      %v594 = vsel %vm336, %v587, %v589
      %v595 = vsel %vm336, %v589, %v591
      %v596 = vsel %vm336, %v591, %v593
      %600 = vrot.lane.b32.xlu0 %v495, 90
      %v601 = vpop.permute.xlu0 %600
      %602 = vrot.lane.b32.xlu0 %v496, 90
      %v603 = vpop.permute.xlu0 %602
      %604 = vrot.lane.b32.xlu0 %v497, 90
      %v605 = vpop.permute.xlu0 %604
      %606 = vrot.lane.b32.xlu0 0.0, 90
      %v607 = vpop.permute.xlu0 %606
      %v608 = vsel %vm351, %v601, %v603
      %v609 = vsel %vm351, %v603, %v605
      %v610 = vsel %vm351, %v605, %v607
      %v614 = vld [vmem:[%s2] sm:$0xf]
      %v615 = vpack.c.bf16 %v510, %v495
      %v616 = vpack.c.bf16 %v511, %v496
      %v617 = vpack.c.bf16 %v512, %v497
      %v618 = vpack.c.bf16 %v538, %v524
      %v619 = vpack.c.bf16 %v539, %v525
      %v620 = vpack.c.bf16 %v540, %v526
      %v621 = vpack.c.bf16 %v566, %v552
      %v622 = vpack.c.bf16 %v567, %v553
      %v623 = vpack.c.bf16 %v568, %v554
      %v624 = vpack.c.bf16 %v594, %v580
      %v625 = vpack.c.bf16 %v595, %v581
      %v626 = vpack.c.bf16 %v596, %v582
      %v627 = vpack.c.bf16 %v608, %v608
      %v628 = vpack.c.bf16 %v609, %v609
      %v629 = vpack.c.bf16 %v610, %v610
      %630 = vset.pattern.permute.xlu0 1
      %631 = vperm.xlu0 %630, %v374
      %v632 = vpop.permute.xlu0 %631
      %v635 = vsel %vm380, %v614, 0
      %v638 = vsel %vm384, %v627, 0
      %v641 = vsel %vm384, %v628, 0
      %v644 = vsel %vm384, %v629, 0
      %646 = vmatprep.subr.bf16.mxu0 0
      %647 = vmatpush1.bf16.msra.mxu0 0
      %648 = vmatprep.subr.bf16.mxu0 0
      %649 = vmatpush1.bf16.msra.mxu0 0
      %650 = vmatprep.subr.bf16.mxu0 0
      %651 = vmatpush1.bf16.msra.mxu0 0
      %652 = vmatprep.subr.bf16.mxu0 %v641
      %653 = vmatpush1.bf16.msra.mxu0 %v638
      %654 = vmatprep.subr.bf16.mxu0 %v625
      %655 = vmatpush1.bf16.msra.mxu0 %v624
      %656 = vmatprep.subr.bf16.mxu0 %v622
      %657 = vmatpush1.bf16.msra.mxu0 %v621
      %658 = vmatprep.subr.bf16.mxu0 %v619
      %659 = vmatpush1.bf16.msra.mxu0 %v618
      %660 = vmatprep.subr.bf16.mxu0 %v616
      %661 = vmatpush1.bf16.msra.mxu0 %v615
      %662 = vmatprep.subr.bf16.mxu0 0
      %663 = vmatpush2.bf16.msra.mxu0 0
      %664 = vmatprep.subr.bf16.mxu0 0
      %665 = vmatpush2.bf16.msra.mxu0 0
      %666 = vmatprep.subr.bf16.mxu0 0
      %667 = vmatpush2.bf16.msra.mxu0 0
      %668 = vmatprep.subr.bf16.mxu0 0
      %669 = vmatpush2.bf16.msra.mxu0 0
      %670 = vmatprep.subr.bf16.mxu0 0
      %671 = vmatpush2.bf16.msra.mxu0 0
      %672 = vmatprep.subr.bf16.mxu0 0
      %673 = vmatpush2.bf16.msra.mxu0 0
      %674 = vmatprep.subr.bf16.mxu0 0
      %675 = vmatpush2.bf16.msra.mxu0 0
      %676 = vmatprep.subr.bf16.mxu0 0
      %677 = vmatpush2.bf16.msra.mxu0 0
      %678 = vmatprep.mubr.bf16.mxu0 0
      %679 = vmatmul.mubr.bf16.gmra.mxu0 %v635
      %v680 = vpop.f32.mrf.mxu0
      %v681 = vadd.f32 %v632, %v680
      %v682 = vpop.f32.mrf.mxu0
      %v683 = vadd.f32 %v632, %v682
      %v684 = vpop.f32.mrf.mxu0
      %v685 = vpop.f32.mrf.mxu0
      %686 = vdwg.mxu0
      %687 = vmatprep.subr.bf16.mxu0 0
      %688 = vmatpush1.bf16.msra.mxu0 0
      %689 = vmatprep.subr.bf16.mxu0 0
      %690 = vmatpush1.bf16.msra.mxu0 0
      %691 = vmatprep.subr.bf16.mxu0 0
      %692 = vmatpush1.bf16.msra.mxu0 0
      %693 = vmatprep.subr.bf16.mxu0 0
      %694 = vmatpush1.bf16.msra.mxu0 %v644
      %695 = vmatprep.subr.bf16.mxu0 0
      %696 = vmatpush1.bf16.msra.mxu0 %v626
      %697 = vmatprep.subr.bf16.mxu0 0
      %698 = vmatpush1.bf16.msra.mxu0 %v623
      %699 = vmatprep.subr.bf16.mxu0 0
      %700 = vmatpush1.bf16.msra.mxu0 %v620
      %701 = vmatprep.subr.bf16.mxu0 0
      %702 = vmatpush1.bf16.msra.mxu0 %v617
      %703 = vmatprep.subr.bf16.mxu0 0
      %704 = vmatpush2.bf16.msra.mxu0 0
      %705 = vmatprep.subr.bf16.mxu0 0
      %706 = vmatpush2.bf16.msra.mxu0 0
      %707 = vmatprep.subr.bf16.mxu0 0
      %708 = vmatpush2.bf16.msra.mxu0 0
      %709 = vmatprep.subr.bf16.mxu0 0
      %710 = vmatpush2.bf16.msra.mxu0 0
      %711 = vmatprep.subr.bf16.mxu0 0
      %712 = vmatpush2.bf16.msra.mxu0 0
      %713 = vmatprep.subr.bf16.mxu0 0
      %714 = vmatpush2.bf16.msra.mxu0 0
      %715 = vmatprep.subr.bf16.mxu0 0
      %716 = vmatpush2.bf16.msra.mxu0 0
      %717 = vmatprep.subr.bf16.mxu0 0
      %718 = vmatpush2.bf16.msra.mxu0 0
      %719 = vmatprep.mubr.bf16.mxu0 0
      %720 = vmatmul.mubr.bf16.gmra.mxu0 %v635
      %v721 = vpop.f32.mrf.mxu0
      %v722 = vadd.f32 %v632, %v721
      %v723 = vpop.f32.mrf.mxu0
      %v724 = vpop.f32.mrf.mxu0
      %v725 = vpop.f32.mrf.mxu0
      %726 = vdwg.mxu0
      %731 = vrot.lane.b32.xlu0 %v226, 90
      %v732 = vpop.permute.xlu0 %731
      %733 = vrot.lane.b32.xlu0 %v227, 90
      %v734 = vpop.permute.xlu0 %733
      %735 = vrot.lane.b32.xlu0 %v228, 90
      %v736 = vpop.permute.xlu0 %735
      %737 = vrot.lane.b32.xlu0 %v229, 90
      %v738 = vpop.permute.xlu0 %737
      %v739 = vsel %vm351, %v732, %v734
      %v740 = vsel %vm351, %v734, %v736
      %v741 = vsel %vm351, %v736, %v738
      %v745 = vadd.f32 %v681, %v739
      %v746 = vadd.f32 %v683, %v740
      %v747 = vadd.f32 %v722, %v741
      %748 = vst [vmem:[%s224] sm:$0xff] %v745
      %749 = vst [vmem:[%s224 + $0x8] sm:$0xff] %v746
      %750 = vst [vmem:[%s224 + $0x10] sm:$0xff] %v747
      %p751 = scmp.lt.s32.totalorder %s16, 1
      %s752 = scalar_select %p751, %s16, 1
      %s753 = smul.addr %s752, 3
      %s754 = smul.addr %s753, 8
      %s755 = scalar_lea.vmem %s5, %s754
      // Predicated region
      $region41: #{shake_block_forward.1} parent=39 // pred_check
        %p756 = pneg %p144
      $region42: #{shake_block_forward.1} parent=39 // pred_check_branch
        %758 = sbr.rel (%p756) target = $region44
      $region43: #{shake_block_forward.1} parent=39 // pred_region
        _
      $region44: #{shake_block_forward.1} parent=39 // pred_fallthru
        _
    $region40: #{shake_block_forward.1} parent=5 // pred_fallthru
      _
    %p759 = scmp.le.s32.totalorder 2, %s11
    // Predicated region
    $region45: #{shake_block_forward.1} parent=5 // pred_check
      %p760 = pneg %p759
    $region46: #{shake_block_forward.1} parent=5 // pred_check_branch
      %762 = sbr.rel (%p760) target = $region48
    $region47: #{shake_block_forward.1} parent=5 // pred_region
      %s763 = ssub.s32 %s11, 2
      // Predicated region
      $region49: #{shake_block_forward.1} parent=47 // pred_check
        %p764 = pneg %p150
      $region50: #{shake_block_forward.1} parent=47 // pred_check_branch
        %766 = sbr.rel (%p764) target = $region52
      $region51: #{shake_block_forward.1} parent=47 // pred_region
        %p767 = scmp.lt.s32.totalorder %s17, 1
        %s768 = scalar_select %p767, %s17, 1
        %s769 = smul.addr %s768, 3
        %s770 = smul.addr %s769, 8
        %s771 = scalar_lea.vmem %s5, %s770
      $region52: #{shake_block_forward.1} parent=47 // pred_fallthru
        _
    $region48: #{shake_block_forward.1} parent=5 // pred_fallthru
      _
  $region6: #{shake_block_forward.1} parent=0 // loop_footer
    %s15 = sadd.s32 1, %s11
  $region7: #{shake_block_forward.1} parent=0 // loop_footer_branch
    %10 = sbr.rel target = $region3
  $region8: #{shake_block_forward.1} parent=0 // loop_exit
    _

</llo_original>
